<compile_context>
chip_gen: v6e
topology: v6e:2x2x1
jax: 0.10.0
libtpu: 0.0.40
codegen_flags: <defaults>
</compile_context>

<pallas_src>
import math

import jax
import jax.numpy as jnp
from jax import lax
from jax.experimental import pallas as pl
from jax.experimental.pallas import tpu as pltpu


# ---------------------------------------------------------------------------
# Tile helper
# ---------------------------------------------------------------------------
def _pick_tile(dim, target, align):
    """Largest tile <= target that divides dim (align-multiple), else full dim.

    TODO(synk): for awkward dims with no aligned divisor this falls back to the
    full dimension (legal but collapses that grid axis); padding + masked edges
    would be needed to keep the pipeline for such shapes.
    """
    if dim <= target:
        return dim
    t = (target // align) * align
    while t >= align:
        if dim % t == 0:
            return t
        t -= align
    return dim


# ---------------------------------------------------------------------------
# Tiled linear kernel:  y = x @ W_t + b   (W_t pre-transposed to (in, out), bf16)
# ---------------------------------------------------------------------------
def _linear_kernel(x_ref, w_ref, b_ref, o_ref, acc_ref):
    k = pl.program_id(2)

    @pl.when(k == 0)
    def _():
        acc_ref[...] = jnp.zeros_like(acc_ref)

    x = x_ref[...].astype(jnp.bfloat16)          # (tm, tk)  (no-op if already bf16)
    acc_ref[...] += jnp.dot(x, w_ref[...],       # (tk, tn) bf16, canonical layout
                            preferred_element_type=jnp.float32)

    @pl.when(k == pl.num_programs(2) - 1)
    def _():
        o_ref[...] = (acc_ref[...] + b_ref[...]).astype(o_ref.dtype)


def linear(x2d, w_t, b, *, out_dtype=None, tm=512, tn=256, tk=512):
    """y = x2d @ w_t + b.  x2d: (M, K), w_t: (K, N) bf16, b: (N,) f32 -> (M, N)."""
    M, K = x2d.shape
    _, N = w_t.shape
    out_dtype = out_dtype if out_dtype is not None else x2d.dtype
    tm = _pick_tile(M, tm, 8)      # sublane dim of x / out blocks
    tn = _pick_tile(N, tn, 128)    # lane dim of out / weight / bias blocks
    tk = _pick_tile(K, tk, 128)    # lane dim of x blocks
    b2 = b.reshape(1, N).astype(jnp.float32)

    return pl.pallas_call(
        _linear_kernel,
        out_shape=jax.ShapeDtypeStruct((M, N), out_dtype),
        grid_spec=pltpu.PrefetchScalarGridSpec(
            num_scalar_prefetch=0,
            grid=(M // tm, N // tn, K // tk),
            in_specs=[
                pl.BlockSpec((tm, tk), lambda i, j, k: (i, k)),
                pl.BlockSpec((tk, tn), lambda i, j, k: (k, j)),
                pl.BlockSpec((1, tn), lambda i, j, k: (0, j)),
            ],
            out_specs=pl.BlockSpec((tm, tn), lambda i, j, k: (i, j)),
            scratch_shapes=[pltpu.VMEM((tm, tn), jnp.float32)],
        ),
        compiler_params=pltpu.CompilerParams(
            dimension_semantics=("parallel", "parallel", "arbitrary")),
    )(x2d, w_t, b2)


# ---------------------------------------------------------------------------
# Flash-tiled attention kernel: one (batch, q-tile) per outer step, kv tiled,
# all heads handled in-kernel via ref-level lane slices, lane-dense output store.
# ---------------------------------------------------------------------------
def _make_flash_kernel(heads, d_head):
    scale = 1.0 / math.sqrt(d_head)

    def kernel(q_ref, k_ref, v_ref, o_ref, m_ref, l_ref, acc_ref):
        # q_ref: (tq, D) bf16, k_ref/v_ref: (tkv, D) bf16, o_ref: (tq, D)
        # m_ref/l_ref: (H, tq, 1) f32, acc_ref: (tq, D) f32
        ki = pl.program_id(2)

        @pl.when(ki == 0)
        def _():
            m_ref[...] = jnp.full_like(m_ref, -jnp.inf)
            l_ref[...] = jnp.zeros_like(l_ref)
            acc_ref[...] = jnp.zeros_like(acc_ref)

        for h in range(heads):                       # static unroll over heads
            lo = h * d_head
            hi = lo + d_head
            qh = (q_ref[:, lo:hi] * scale).astype(jnp.bfloat16)   # (tq, dh)
            kh = k_ref[:, lo:hi].astype(jnp.bfloat16)             # (tkv, dh)
            vh = v_ref[:, lo:hi].astype(jnp.bfloat16)
            # s = qh @ kh^T without materializing a transpose.
            s = lax.dot_general(qh, kh, (((1,), (1,)), ((), ())),
                                preferred_element_type=jnp.float32)  # (tq, tkv)
            m_prev = m_ref[h]                                         # (tq, 1)
            m_new = jnp.maximum(m_prev, jnp.max(s, axis=-1, keepdims=True))
            alpha = jnp.exp(m_prev - m_new)
            p = jnp.exp(s - m_new)                                    # (tq, tkv)
            l_ref[h] = alpha * l_ref[h] + jnp.sum(p, axis=-1, keepdims=True)
            pv = jnp.dot(p.astype(jnp.bfloat16), vh,
                         preferred_element_type=jnp.float32)          # (tq, dh)
            acc_ref[:, lo:hi] = alpha * acc_ref[:, lo:hi] + pv
            m_ref[h] = m_new

        @pl.when(ki == pl.num_programs(2) - 1)
        def _():
            # TODO(synk): nn.Dropout(0.1) on the attention probabilities is
            # omitted (eval-mode identity); training parity needs pltpu.prng_*.
            for h in range(heads):
                lo = h * d_head
                hi = lo + d_head
                inv = pl.reciprocal(l_ref[h], approx=False)           # exact
                acc_ref[:, lo:hi] = acc_ref[:, lo:hi] * inv
            o_ref[...] = acc_ref[...].astype(o_ref.dtype)   # one lane-dense store

    return kernel


def flash_attention(q_arr, k_arr, v_arr, *, heads, d_model,
                    q_block=0, k_block=0, v_block=0,
                    out_dtype=jnp.bfloat16, tq=256, tkv=256):
    """q/k/v arrays are (B, S, n*D); the projection used lives at block index
    {q,k,v}_block (block size D) along the last dim, so a fused (B, S, 3D) QKV
    activation can be consumed directly with no split/copy."""
    B, Sq, _ = q_arr.shape
    _, Skv, _ = k_arr.shape
    D = d_model
    dh = D // heads
    tq = _pick_tile(Sq, tq, 8)
    tkv = _pick_tile(Skv, tkv, 8)

    q_spec = pl.BlockSpec((None, tq, D), lambda b, qi, ki: (b, qi, q_block))
    k_spec = pl.BlockSpec((None, tkv, D), lambda b, qi, ki: (b, ki, k_block))
    v_spec = pl.BlockSpec((None, tkv, D), lambda b, qi, ki: (b, ki, v_block))
    o_spec = pl.BlockSpec((None, tq, D), lambda b, qi, ki: (b, qi, 0))

    return pl.pallas_call(
        _make_flash_kernel(heads, dh),
        out_shape=jax.ShapeDtypeStruct((B, Sq, D), out_dtype),
        grid_spec=pltpu.PrefetchScalarGridSpec(
            num_scalar_prefetch=0,
            grid=(B, Sq // tq, Skv // tkv),
            in_specs=[q_spec, k_spec, v_spec],
            out_specs=o_spec,
            scratch_shapes=[
                pltpu.VMEM((heads, tq, 1), jnp.float32),   # running max  m
                pltpu.VMEM((heads, tq, 1), jnp.float32),   # running sum  l
                pltpu.VMEM((tq, D), jnp.float32),          # output accumulator
            ],
        ),
        compiler_params=pltpu.CompilerParams(
            dimension_semantics=("parallel", "parallel", "arbitrary")),
    )(q_arr, k_arr, v_arr)


# ---------------------------------------------------------------------------
# MultiHeadAttention forward
# ---------------------------------------------------------------------------
def multi_head_attention(prep, q, k, v, heads):
    B, Sq, D = q.shape
    _, Skv, _ = k.shape

    if q is k and k is v and D % 128 == 0:
        # Self-attention fast path: one fused QKV projection (weights fused once
        # at prepare time); attention reads q/k/v straight out of the fused
        # (B, S, 3D) activation via BlockSpec offsets -- no jnp.split, no copies.
        y = linear(q.reshape(B * Sq, D), prep["wqkv_t"], prep["bqkv"],
                   out_dtype=jnp.bfloat16)                       # (B*Sq, 3D)
        y = y.reshape(B, Sq, 3 * D)
        attn = flash_attention(y, y, y, heads=heads, d_model=D,
                               q_block=0, k_block=1, v_block=2)
    else:
        qp = linear(q.reshape(B * Sq, D), prep["wq_t"], prep["bq"],
                    out_dtype=jnp.bfloat16).reshape(B, Sq, D)
        kp = linear(k.reshape(B * Skv, D), prep["wk_t"], prep["bk"],
                    out_dtype=jnp.bfloat16).reshape(B, Skv, D)
        vp = linear(v.reshape(B * Skv, D), prep["wv_t"], prep["bv"],
                    out_dtype=jnp.bfloat16).reshape(B, Skv, D)
        attn = flash_attention(qp, kp, vp, heads=heads, d_model=D)

    # Head merge happened lane-wise inside the attention kernel; the output is
    # already (B, Sq, D) in concat layout, so the final reshape is free.
    out = linear(attn.reshape(B * Sq, D), prep["wo_t"], prep["bo"],
                 out_dtype=jnp.float32)
    return out.reshape(B, Sq, D)


def init_params(key, d_model):
    """nn.Linear-style init: U(-1/sqrt(fan_in), 1/sqrt(fan_in)), PyTorch layout."""
    bound = 1.0 / math.sqrt(d_model)
    ks = jax.random.split(key, 8)
    u = lambda k_, shape: jax.random.uniform(k_, shape, jnp.float32, -bound, bound)
    return {
        "wq": u(ks[0], (d_model, d_model)), "bq": u(ks[1], (d_model,)),
        "wk": u(ks[2], (d_model, d_model)), "bk": u(ks[3], (d_model,)),
        "wv": u(ks[4], (d_model, d_model)), "bv": u(ks[5], (d_model,)),
        "wo": u(ks[6], (d_model, d_model)), "bo": u(ks[7], (d_model,)),
    }


def prepare_params(params):
    """One-time weight prep, hoisted out of the per-call path:
    PyTorch (out, in) -> (in, out) transpose, bf16 cast, fused QKV concat."""
    t16 = lambda w: jnp.asarray(w.T, dtype=jnp.bfloat16)
    prep = {
        "wq_t": t16(params["wq"]), "bq": params["bq"],
        "wk_t": t16(params["wk"]), "bk": params["bk"],
        "wv_t": t16(params["wv"]), "bv": params["bv"],
        "wo_t": t16(params["wo"]), "bo": params["bo"],
    }
    prep["wqkv_t"] = jnp.concatenate(
        [prep["wq_t"], prep["wk_t"], prep["wv_t"]], axis=1)          # (D, 3D) bf16
    prep["bqkv"] = jnp.concatenate(
        [params["bq"], params["bk"], params["bv"]], axis=0)          # (3D,)  f32
    return prep


# ---------------------------------------------------------------------------
# Pure-JAX f32 reference for sanity checking
# ---------------------------------------------------------------------------
def reference_mha(params, q, k, v, heads):
    B, Sq, D = q.shape
    _, Skv, _ = k.shape
    dh = D // heads

    def proj(x, w, b, S):
        y = x.reshape(-1, D) @ w.T + b
        return jnp.transpose(y.reshape(B, S, heads, dh), (0, 2, 1, 3))

    qh = proj(q, params["wq"], params["bq"], Sq)
    kh = proj(k, params["wk"], params["bk"], Skv)
    vh = proj(v, params["wv"], params["bv"], Skv)
    s = jnp.einsum("bhqd,bhkd->bhqk", qh, kh) / math.sqrt(dh)
    p = jax.nn.softmax(s, axis=-1)
    o = jnp.einsum("bhqk,bhkd->bhqd", p, vh)
    concat = jnp.transpose(o, (0, 2, 1, 3)).reshape(B * Sq, D)
    return (concat @ params["wo"].T + params["bo"]).reshape(B, Sq, D)


if __name__ == "__main__":
    B, S, D, H = 2, 8, 128, 4   # batch, seq, d_model, heads  (d_head = 32)

    key = jax.random.PRNGKey(0)
    kp, kq, kk, kv = jax.random.split(key, 4)
    params = init_params(kp, D)
    prep = prepare_params(params)   # one-time: transpose + bf16 cast + QKV fuse
    q = jax.random.normal(kq, (B, S, D), jnp.float32)
    k = jax.random.normal(kk, (B, S, D), jnp.float32)
    v = jax.random.normal(kv, (B, S, D), jnp.float32)

    # Cross-attention path (distinct q, k, v -> separate projections).
    out = jax.block_until_ready(multi_head_attention(prep, q, k, v, H))
    ref = reference_mha(params, q, k, v, H)
    assert out.shape == (B, S, D)
    # Tolerance covers bf16 weights/activations (f32 accumulation).
    assert jnp.allclose(out, ref, atol=5e-2, rtol=5e-2), "mismatch (cross-attn)"

    # Self-attention fast path (fused QKV projection, no split).
    out_self = jax.block_until_ready(multi_head_attention(prep, q, q, q, H))
    ref_self = reference_mha(params, q, q, q, H)
    assert jnp.allclose(out_self, ref_self, atol=5e-2, rtol=5e-2), \
        "mismatch (self-attn fused path)"

    print("KERNEL_OK")
</pallas_src>

<mosaic_0001>
module attributes {stable_mosaic.version = 11 : i64} {
  func.func @_linear_kernel(%arg0: i32, %arg1: i32, %arg2: i32, %arg3: memref<16x128xf32, #tpu.memory_space<vmem>>, %arg4: memref<128x128xbf16, #tpu.memory_space<vmem>>, %arg5: memref<1x128xf32, #tpu.memory_space<vmem>>, %arg6: memref<16x128xbf16, #tpu.memory_space<vmem>>, %arg7: memref<16x128xf32, #tpu.memory_space<vmem>>) attributes {dimension_semantics = [#tpu.dimension_semantics<parallel>, #tpu.dimension_semantics<parallel>, #tpu.dimension_semantics<arbitrary>], iteration_bounds = array<i64: 1, 1, 1>, scalar_prefetch = 0 : i64, scratch_operands = 1 : i64, tpu.core_type = #tpu.core_type<tc>, window_params = [{transform_indices = @transform_0, window_bounds = array<i64: 16, 128>}, {transform_indices = @transform_1, window_bounds = array<i64: 128, 128>}, {transform_indices = @transform_2, window_bounds = array<i64: 1, 128>}, {transform_indices = @transform_3, window_bounds = array<i64: 16, 128>}]} {
    %c0_i32 = arith.constant 0 : i32
    %0 = arith.cmpi eq, %arg2, %c0_i32 : i32
    %1 = arith.extui %0 : i1 to i32
    %c0_i32_0 = arith.constant 0 : i32
    %2 = arith.cmpi ne, %1, %c0_i32_0 : i32
    scf.if %2 {
      %cst_10 = arith.constant 0.000000e+00 : f32
      %13 = vector.broadcast %cst_10 : f32 to vector<16x128xf32>
      %c0_11 = arith.constant 0 : index
      %c0_12 = arith.constant 0 : index
      %14 = vector.load %arg7[%c0_11, %c0_12] : memref<16x128xf32, #tpu.memory_space<vmem>>, vector<16x128xf32>
      tpu.vector_store %arg7[%c0_11, %c0_12], %13 {strides = array<i32>} : memref<16x128xf32, #tpu.memory_space<vmem>>, vector<16x128xf32>,
    } else {
    }
    %c0 = arith.constant 0 : index
    %c0_1 = arith.constant 0 : index
    %3 = vector.load %arg3[%c0, %c0_1] : memref<16x128xf32, #tpu.memory_space<vmem>>, vector<16x128xf32>
    %4 = arith.truncf %3 : vector<16x128xf32> to vector<16x128xbf16>
    %c0_2 = arith.constant 0 : index
    %c0_3 = arith.constant 0 : index
    %5 = vector.load %arg7[%c0_2, %c0_3] : memref<16x128xf32, #tpu.memory_space<vmem>>, vector<16x128xf32>
    %c0_4 = arith.constant 0 : index
    %c0_5 = arith.constant 0 : index
    %6 = vector.load %arg4[%c0_4, %c0_5] : memref<128x128xbf16, #tpu.memory_space<vmem>>, vector<128x128xbf16>
    %cst = arith.constant dense<0.000000e+00> : vector<16x128xf32>
    %7 = tpu.matmul %4, %6, %cst {dimension_numbers = #tpu.dot_dimension_numbers<[1], [0], [0], [1], [0, 0, 1, 1], [], []>} : vector<16x128xbf16>, vector<128x128xbf16>, vector<16x128xf32> -> vector<16x128xf32>
    %8 = arith.addf %5, %7 : vector<16x128xf32>
    %c0_6 = arith.constant 0 : index
    %c0_7 = arith.constant 0 : index
    %9 = vector.load %arg7[%c0_6, %c0_7] : memref<16x128xf32, #tpu.memory_space<vmem>>, vector<16x128xf32>
    tpu.vector_store %arg7[%c0_6, %c0_7], %8 {strides = array<i32>} : memref<16x128xf32, #tpu.memory_space<vmem>>, vector<16x128xf32>,
    %c0_i32_8 = arith.constant 0 : i32
    %10 = arith.cmpi eq, %arg2, %c0_i32_8 : i32
    %11 = arith.extui %10 : i1 to i32
    %c0_i32_9 = arith.constant 0 : i32
    %12 = arith.cmpi ne, %11, %c0_i32_9 : i32
    scf.if %12 {
      %c0_10 = arith.constant 0 : index
      %c0_11 = arith.constant 0 : index
      %13 = vector.load %arg7[%c0_10, %c0_11] : memref<16x128xf32, #tpu.memory_space<vmem>>, vector<16x128xf32>
      %c0_12 = arith.constant 0 : index
      %c0_13 = arith.constant 0 : index
      %14 = vector.load %arg5[%c0_12, %c0_13] : memref<1x128xf32, #tpu.memory_space<vmem>>, vector<1x128xf32>
      %15 = vector.broadcast %14 : vector<1x128xf32> to vector<16x128xf32>
      %16 = arith.addf %13, %15 : vector<16x128xf32>
      %17 = arith.truncf %16 : vector<16x128xf32> to vector<16x128xbf16>
      %c0_14 = arith.constant 0 : index
      %c0_15 = arith.constant 0 : index
      %18 = vector.load %arg6[%c0_14, %c0_15] : memref<16x128xbf16, #tpu.memory_space<vmem>>, vector<16x128xbf16>
      tpu.vector_store %arg6[%c0_14, %c0_15], %17 {strides = array<i32>} : memref<16x128xbf16, #tpu.memory_space<vmem>>, vector<16x128xbf16>,
    } else {
    }
    return
  }
  func.func @transform_0(%arg0: i32, %arg1: i32, %arg2: i32) -> (i32, i32) {
    %c0_i32 = arith.constant 0 : i32
    return %arg0, %arg2 : i32, i32
  }
  func.func @transform_1(%arg0: i32, %arg1: i32, %arg2: i32) -> (i32, i32) {
    %c0_i32 = arith.constant 0 : i32
    return %arg2, %arg1 : i32, i32
  }
  func.func @transform_2(%arg0: i32, %arg1: i32, %arg2: i32) -> (i32, i32) {
    %c0_i32 = arith.constant 0 : i32
    %c0_i32_0 = arith.constant 0 : i32
    return %c0_i32, %arg1 : i32, i32
  }
  func.func @transform_3(%arg0: i32, %arg1: i32, %arg2: i32) -> (i32, i32) {
    %c0_i32 = arith.constant 0 : i32
    return %arg0, %arg1 : i32, i32
  }
}

</mosaic_0001>

<llo_original>
// kernel: tpu_custom_call.1
$region0: #{tpu_custom_call.1}
  #allocation0 [shape = 'u32[]', space=smem, size = 0x4, offset = 0x4, fixed_abs, tag = 'smem constant byte address 0x4 - core index']
  #allocation1 [shape = 'u32[144,128]{1,0:T(1,128)}', space=vmem, size = 0x12000, scoped, tag = 'internal scratch']
  #allocation2 [shape = 'f32[16,128]{1,0:T(8,128)}', space=vmem, size = 0x2000, scoped, tag = 'scratch operand']
  %s0 = inlined_call_operand.hbm [shape: f32[16,128], index: 0, kind: input, shape index: {}]
  %s1 = inlined_call_operand.hbm [shape: bf16[128,128], index: 1, kind: input, shape index: {}]
  %s2 = inlined_call_operand.vmem [shape: f32[1,128], index: 2, kind: input, shape index: {}]
  %s3 = inlined_call_operand.hbm [shape: bf16[16,128], index: 3, kind: output, shape index: {}]
  %s4 = sld [smem:[#allocation0]]
  $region38: #{tpu_custom_call.1} parent=0
    _
  %s6 = ssub.s32 1, %s4
  %s7 = scalar_select 0, %s6, %s4
  $region1: #{tpu_custom_call.1} parent=0
    #allocation3 [shape = 'u8[8192]{0}', space=vmem, size = 0x2000, scoped, tag = 'input window, operand 0, single buffered']
    #allocation4 [shape = 's32[1]{0}', space=sflag, size = 0x4, scoped, tag = 'scoped memory for tpu_custom_call.1']
    #allocation5 [shape = 's32[1]{0}', space=sflag, size = 0x4, scoped, tag = 'scoped memory for tpu_custom_call.1']
    #allocation6 [shape = 'u8[32768]{0}', space=vmem, size = 0x8000, scoped, tag = 'input window, operand 1, single buffered']
    #allocation7 [shape = 's32[1]{0}', space=sflag, size = 0x4, scoped, tag = 'scoped memory for tpu_custom_call.1']
    #allocation8 [shape = 'u8[4096]{0}', space=vmem, size = 0x1000, scoped, tag = 'output window, operand 0, single buffered']
    %8 = vsyncpa [#allocation4], 0
    %9 = vsyncpa [#allocation7], 0
    %10 = vsyncpa [#allocation5], 0
    // Predicated region
    $region2: #{tpu_custom_call.1} parent=1 // pred_check
      _
    $region3: #{tpu_custom_call.1} parent=1 // pred_check_branch
      %12 = sbr.rel (0) target = $region5
    $region4: #{tpu_custom_call.1} parent=1 // pred_region
      %s14 = ssub.s32 256, 256
      %15 = vsyncadd [#allocation4], %s14
      %s16 = sshll.u32 [#allocation3], 4
      %s17 = int_to_ptr.vmem [resolvable:$true] %s16
      %22 = dma.hbm_to_vmem [thread:$0]  %s0, 256, %s17, [#allocation4], 128, 128, 8
    $region5: #{tpu_custom_call.1} parent=1 // pred_fallthru
      _
    // Predicated region
    $region6: #{tpu_custom_call.1} parent=1 // pred_check
      _
    $region7: #{tpu_custom_call.1} parent=1 // pred_check_branch
      %24 = sbr.rel (0) target = $region9
    $region8: #{tpu_custom_call.1} parent=1 // pred_region
      %s26 = ssub.s32 1024, 1024
      %27 = vsyncadd [#allocation7], %s26
      %s28 = sshll.u32 [#allocation6], 4
      %s29 = int_to_ptr.vmem [resolvable:$true] %s28
      %34 = dma.hbm_to_vmem [thread:$0]  %s1, 1024, %s29, [#allocation7], 64, 64, 4
    $region9: #{tpu_custom_call.1} parent=1 // pred_fallthru
      _
    // Predicated region
    $region10: #{tpu_custom_call.1} parent=1 // pred_check
      _
    $region11: #{tpu_custom_call.1} parent=1 // pred_check_branch
      %36 = sbr.rel (0) target = $region13
    $region12: #{tpu_custom_call.1} parent=1 // pred_region
      _
    $region13: #{tpu_custom_call.1} parent=1 // pred_fallthru
      _
    // Predicated region
    $region14: #{tpu_custom_call.1} parent=1 // pred_check
      _
    $region15: #{tpu_custom_call.1} parent=1 // pred_check_branch
      %38 = sbr.rel (0) target = $region17
    $region16: #{tpu_custom_call.1} parent=1 // pred_region
      %39 = dma.done [#allocation4], 256
    $region17: #{tpu_custom_call.1} parent=1 // pred_fallthru
      _
    // Predicated region
    $region18: #{tpu_custom_call.1} parent=1 // pred_check
      _
    $region19: #{tpu_custom_call.1} parent=1 // pred_check_branch
      %41 = sbr.rel (0) target = $region21
    $region20: #{tpu_custom_call.1} parent=1 // pred_region
      %42 = dma.done [#allocation7], 1024
    $region21: #{tpu_custom_call.1} parent=1 // pred_fallthru
      _
    %p44 = scmp.eq.s32.totalorder 0, 0
    // Predicated region
    $region22: #{tpu_custom_call.1} parent=1 // pred_check
      %p45 = pneg %p44
    $region23: #{tpu_custom_call.1} parent=1 // pred_check_branch
      %47 = sbr.rel (%p45) target = $region25
    $region24: #{tpu_custom_call.1} parent=1 // pred_region
      %48 = vst [vmem:[#allocation2] sm:$0xff] 0.0
      %49 = vst [vmem:[#allocation2 + $0x8] sm:$0xff] 0.0
    $region25: #{tpu_custom_call.1} parent=1 // pred_fallthru
      _
    %v50 = vld [vmem:[#allocation3] sm:$0xff]
    %v51 = vld [vmem:[#allocation3 + $0x8] sm:$0xff]
    %v52 = vpack.c.bf16 %v51, %v50
    %v53 = vld [vmem:[#allocation2] sm:$0xff]
    %v54 = vld [vmem:[#allocation2 + $0x8] sm:$0xff]
    %v55 = vld [vmem:[#allocation6] sm:$0xf]
    %v56 = vld [vmem:[#allocation6 + $0x4] sm:$0xf]
    %v57 = vld [vmem:[#allocation6 + $0x8] sm:$0xf]
    %v58 = vld [vmem:[#allocation6 + $0xc] sm:$0xf]
    %v59 = vld [vmem:[#allocation6 + $0x10] sm:$0xf]
    %v60 = vld [vmem:[#allocation6 + $0x14] sm:$0xf]
    %v61 = vld [vmem:[#allocation6 + $0x18] sm:$0xf]
    %v62 = vld [vmem:[#allocation6 + $0x1c] sm:$0xf]
    %v63 = vld [vmem:[#allocation6 + $0x20] sm:$0xf]
    %v64 = vld [vmem:[#allocation6 + $0x24] sm:$0xf]
    %v65 = vld [vmem:[#allocation6 + $0x28] sm:$0xf]
    %v66 = vld [vmem:[#allocation6 + $0x2c] sm:$0xf]
    %v67 = vld [vmem:[#allocation6 + $0x30] sm:$0xf]
    %v68 = vld [vmem:[#allocation6 + $0x34] sm:$0xf]
    %v69 = vld [vmem:[#allocation6 + $0x38] sm:$0xf]
    %v70 = vld [vmem:[#allocation6 + $0x3c] sm:$0xf]
    %v87 = vunpack.c.l.b16 %v55
    %v88 = vunpack.c.l.b16 %v56
    %v89 = vunpack.c.l.b16 %v57
    %v90 = vunpack.c.l.b16 %v58
    %v91 = vunpack.c.l.b16 %v59
    %v92 = vunpack.c.l.b16 %v60
    %v93 = vunpack.c.l.b16 %v61
    %v94 = vunpack.c.l.b16 %v62
    %v95 = vunpack.c.l.b16 %v63
    %v96 = vunpack.c.l.b16 %v64
    %v97 = vunpack.c.l.b16 %v65
    %v98 = vunpack.c.l.b16 %v66
    %v99 = vunpack.c.l.b16 %v67
    %v100 = vunpack.c.l.b16 %v68
    %v101 = vunpack.c.l.b16 %v69
    %v102 = vunpack.c.l.b16 %v70
    %v103 = vpack.c.b16 %v88, %v87
    %v104 = vpack.c.b16 %v90, %v89
    %v105 = vpack.c.b16 %v92, %v91
    %v106 = vpack.c.b16 %v94, %v93
    %v107 = vpack.c.b16 %v96, %v95
    %v108 = vpack.c.b16 %v98, %v97
    %v109 = vpack.c.b16 %v100, %v99
    %v110 = vpack.c.b16 %v102, %v101
    %119 = vmatprep.subr.bf16.mxu0 0
    %120 = vmatpush1.bf16.msra.mxu0 %v110
    %121 = vmatprep.subr.bf16.mxu0 0
    %122 = vmatpush1.bf16.msra.mxu0 %v109
    %123 = vmatprep.subr.bf16.mxu0 0
    %124 = vmatpush1.bf16.msra.mxu0 %v108
    %125 = vmatprep.subr.bf16.mxu0 0
    %126 = vmatpush1.bf16.msra.mxu0 %v107
    %127 = vmatprep.subr.bf16.mxu0 0
    %128 = vmatpush1.bf16.msra.mxu0 %v106
    %129 = vmatprep.subr.bf16.mxu0 0
    %130 = vmatpush1.bf16.msra.mxu0 %v105
    %131 = vmatprep.subr.bf16.mxu0 0
    %132 = vmatpush1.bf16.msra.mxu0 %v104
    %133 = vmatprep.subr.bf16.mxu0 0
    %134 = vmatpush1.bf16.msra.mxu0 %v103
    %135 = vmatprep.subr.bf16.mxu0 0
    %136 = vmatpush2.bf16.msra.mxu0 0
    %137 = vmatprep.subr.bf16.mxu0 0
    %138 = vmatpush2.bf16.msra.mxu0 0
    %139 = vmatprep.subr.bf16.mxu0 0
    %140 = vmatpush2.bf16.msra.mxu0 0
    %141 = vmatprep.subr.bf16.mxu0 0
    %142 = vmatpush2.bf16.msra.mxu0 0
    %143 = vmatprep.subr.bf16.mxu0 0
    %144 = vmatpush2.bf16.msra.mxu0 0
    %145 = vmatprep.subr.bf16.mxu0 0
    %146 = vmatpush2.bf16.msra.mxu0 0
    %147 = vmatprep.subr.bf16.mxu0 0
    %148 = vmatpush2.bf16.msra.mxu0 0
    %149 = vmatprep.subr.bf16.mxu0 0
    %150 = vmatpush2.bf16.msra.mxu0 0
    %151 = vmatprep.mubr.bf16.mxu0 0
    %152 = vmatmul.mubr.bf16.gmra.mxu0 %v52
    %v153 = vpop.f32.mrf.mxu0
    %v154 = vadd.f32 0.0, %v153
    %v155 = vpop.f32.mrf.mxu0
    %v156 = vpop.f32.mrf.mxu0
    %v157 = vadd.f32 0.0, %v156
    %v158 = vpop.f32.mrf.mxu0
    %159 = vdwg.mxu0
    %v160 = vadd.f32 %v53, %v154
    %v161 = vadd.f32 %v54, %v157
    %162 = vst [vmem:[#allocation2] sm:$0xff] %v160
    %163 = vst [vmem:[#allocation2 + $0x8] sm:$0xff] %v161
    // Predicated region
    $region26: #{tpu_custom_call.1} parent=1 // pred_check
      %p164 = pneg %p44
    $region27: #{tpu_custom_call.1} parent=1 // pred_check_branch
      %166 = sbr.rel (%p164) target = $region29
    $region28: #{tpu_custom_call.1} parent=1 // pred_region
      %v167 = vld [vmem:[#allocation2] sm:$0xff]
      %v168 = vld [vmem:[#allocation2 + $0x8] sm:$0xff]
      %v169 = vld [vmem:[%s2] sm:$0x1]
      %v171 = vlaneseq
      %v172 = vshrl.u32 %v171, 7
      %v173 = vsub.s32 0, %v172
      %v174 = vrot.slane %v169, %v173
      %v176 = vadd.f32 %v167, %v174
      %v177 = vadd.f32 %v168, %v174
      %v178 = vpack.c.bf16 %v177, %v176
      %v180 = vunpack.c.l.b16 %v178
      %v181 = vunpack.c.h.b16 %v178
      %v182 = vpack.c.b16 %v180, %v180
      %v183 = vpack.c.b16 %v181, %v181
      %186 = vst [vmem:[#allocation8] sm:$0xf] %v182
      %187 = vst [vmem:[#allocation8 + $0x4] sm:$0xf] %v183
    $region29: #{tpu_custom_call.1} parent=1 // pred_fallthru
      _
    // Predicated region
    $region30: #{tpu_custom_call.1} parent=1 // pred_check
      _
    $region31: #{tpu_custom_call.1} parent=1 // pred_check_branch
      %189 = sbr.rel (0) target = $region33
    $region32: #{tpu_custom_call.1} parent=1 // pred_region
      %s191 = ssub.s32 128, 128
      %192 = vsyncadd [#allocation5], %s191
      %s193 = sshll.u32 [#allocation8], 4
      %s194 = int_to_ptr.vmem [resolvable:$true] %s193
      %199 = dma.vmem_to_hbm [thread:$0]  %s194, 128, %s3, [#allocation5], 64, 64, 4
    $region33: #{tpu_custom_call.1} parent=1 // pred_fallthru
      _
    // Predicated region
    $region34: #{tpu_custom_call.1} parent=1 // pred_check
      _
    $region35: #{tpu_custom_call.1} parent=1 // pred_check_branch
      %201 = sbr.rel (0) target = $region37
    $region36: #{tpu_custom_call.1} parent=1 // pred_region
      %202 = dma.done [#allocation5], 128
    $region37: #{tpu_custom_call.1} parent=1 // pred_fallthru
      _
    %203 = vsyncpa [#allocation4], 1
    %204 = vsyncpa [#allocation7], 1
    %205 = vsyncpa [#allocation5], 1

</llo_original>
